<compile_context>
chip_gen: v6e
topology: v6e:2x2x1
jax: 0.10.0
libtpu: 0.0.40
codegen_flags: <defaults>
</compile_context>

<pallas_src>
import jax
import jax.numpy as jnp
from jax.experimental import pallas as pl
from jax.experimental.pallas import tpu as pltpu


LANE = 128           # lane width (batch padding granularity)
SUB = 8              # sublane granularity (nq / K padding)
MAX_B_BLOCK = 1024   # lanes per grid step (serial chain is latency-bound)


def _round_up(x, m):
    return ((x + m - 1) // m) * m


def _num_tensorcores():
    """Best-effort TensorCores-per-chip (2 on v7x, 1 on v5e/v6e)."""
    try:
        return int(getattr(jax.devices()[0], "num_cores", 1) or 1)
    except Exception:
        return 1


# ----------------------------------------------------------------------------
# Pallas kernel (built per (nq, nq_p) so the loop runs the TRUE nq steps)
# ----------------------------------------------------------------------------
def _make_fwd_kernel(nq, nq_p):
    def kernel(xiu_ref, w_in_ref, b_in_ref, d11_ref, b1_ref, out_ref):
        # Fused affine part on the MXU:
        #   rows [0, nq_p)        -> v0 = C1 @ xi + D12 @ u + bv
        #   rows [nq_p, nq_p+nx)  -> A  @ xi + B2  @ u + bx
        acc = (jnp.dot(w_in_ref[...], xiu_ref[...],
                       preferred_element_type=jnp.float32)
               + b_in_ref[...])                    # (nq_p + nx, Bblk)

        v = acc[:nq_p, :]                          # running pre-activations
        out = acc[nq_p:, :]                        # xi_dot accumulator

        d11 = d11_ref[...]                         # (nq_p, nq_p), strictly LT
        b1 = b1_ref[...]                           # (nx, nq_p)

        # Forward substitution over the TRUE nq (padded rows never touched
        # on the serial chain).  Fully unrolled: nq is static and small.
        for i in range(nq):
            w_i = jnp.tanh(v[i:i + 1, :])          # (1, Bblk)  EUP, serial
            # B1 contribution fused as a rank-1 accumulate (off the chain).
            out = out + b1[:, i:i + 1] * w_i       # (nx,1)*(1,Bblk)  VPU
            if i + 1 < nq:
                # Rank-1 update of remaining pre-activations.  Rows k <= i
                # are also written but never re-read (D11 strictly lower-tri).
                v = v + d11[:, i:i + 1] * w_i      # (nq_p,1)*(1,Bblk) VPU

        out_ref[...] = out.astype(out_ref.dtype)

    return kernel


# ----------------------------------------------------------------------------
# Weight packing (done ONCE, outside the per-call path)
# ----------------------------------------------------------------------------
def pack_weights(params):
    A = params["A"]; B1 = params["B1"]; B2 = params["B2"]
    C1 = params["C1"]; D11 = params["D11"]; D12 = params["D12"]
    bv = params["bv"].reshape(-1, 1)               # (nq, 1)
    bx = params["bx"].reshape(-1, 1)               # (nx, 1)

    nq, nx = C1.shape
    nu = D12.shape[1]
    nq_p = _round_up(nq, SUB)
    K = nx + nu
    K_p = _round_up(K, SUB)
    pq = nq_p - nq

    W_top = jnp.concatenate([C1, D12], axis=1)     # (nq, K)
    W_bot = jnp.concatenate([A, B2], axis=1)       # (nx, K)
    W_in = jnp.concatenate(
        [jnp.pad(W_top, ((0, pq), (0, 0))), W_bot], axis=0)     # (nq_p+nx, K)
    W_in = jnp.pad(W_in, ((0, 0), (0, K_p - K))).astype(jnp.float32)
    b_in = jnp.concatenate(
        [jnp.pad(bv, ((0, pq), (0, 0))), bx], axis=0).astype(jnp.float32)
    D11p = jnp.pad(D11, ((0, pq), (0, pq))).astype(jnp.float32)
    B1p = jnp.pad(B1, ((0, 0), (0, pq))).astype(jnp.float32)

    return dict(W_in=W_in, b_in=b_in, D11=D11p, B1=B1p,
                nx=nx, nu=nu, nq=nq, nq_p=nq_p, K=K, K_p=K_p)


# ----------------------------------------------------------------------------
# Forward wrapper
# ----------------------------------------------------------------------------
def _choose_block(B, n_cores):
    Bp0 = _round_up(max(B, LANE), LANE)
    if n_cores > 1 and Bp0 >= n_cores * LANE:
        # v7x: >= n_cores grid steps so the "parallel" axis uses both TCs.
        per_core = _round_up(-(-Bp0 // n_cores), LANE)
        b_blk = min(MAX_B_BLOCK, per_core)
    else:
        # v5e/v6e: one TC -> single largest block (fewest grid steps).
        b_blk = min(MAX_B_BLOCK, Bp0)
    Bp = _round_up(Bp0, b_blk)
    return b_blk, Bp


def contractive_forward(xi, u, packed):
    # TODO(synk): in an ODE/RNN integrator, keep xi/u lane-major (nx,B)/(nu,B)
    # across timesteps and consume the (nx,Bp) output directly to drop the
    # transposes/concat relayouts from the per-step path.
    B, nx = xi.shape
    nu = u.shape[1]
    nq, nq_p = packed["nq"], packed["nq_p"]
    K, K_p = packed["K"], packed["K_p"]
    W_in, b_in = packed["W_in"], packed["b_in"]
    D11, B1 = packed["D11"], packed["B1"]
    assert nx == packed["nx"] and nu == packed["nu"]

    n_cores = _num_tensorcores()
    b_blk, Bp = _choose_block(B, n_cores)
    grid = (Bp // b_blk,)

    # Batch on lanes, contraction dim padded to sublane multiple.
    xiu = jnp.concatenate([xi.T, u.T], axis=0).astype(jnp.float32)   # (K, B)
    xiu = jnp.pad(xiu, ((0, K_p - K), (0, Bp - B)))                  # (K_p,Bp)

    # Explicit VMEM budget: double-buffered streamed blocks + weights (x2 for
    # default double-buffering), capped well inside v7x's 64 MiB.
    streamed = 4 * 2 * (K_p + nx) * b_blk
    resident = 4 * 2 * int(W_in.size + b_in.size + D11.size + B1.size)
    vmem_limit = int(min(48 << 20, max(8 << 20, 2 * (streamed + resident))))

    flops = 2 * Bp * ((nq_p + nx) * K_p + nq * (nq_p + nx))
    bytes_accessed = 4 * (K_p * Bp + nx * Bp + (nq_p + nx) * (K_p + 1)
                          + nq_p * nq_p + nx * nq_p)
    cost = pl.CostEstimate(flops=int(flops), transcendentals=int(Bp * nq),
                           bytes_accessed=int(bytes_accessed))

    out_t = pl.pallas_call(
        _make_fwd_kernel(nq, nq_p),
        out_shape=jax.ShapeDtypeStruct((nx, Bp), jnp.float32),
        grid_spec=pltpu.PrefetchScalarGridSpec(
            num_scalar_prefetch=0,
            grid=grid,
            in_specs=[
                pl.BlockSpec((K_p, b_blk), lambda i: (0, i)),    # streamed xiu
                pl.BlockSpec(W_in.shape, lambda i: (0, 0)),      # resident
                pl.BlockSpec(b_in.shape, lambda i: (0, 0)),      # resident
                pl.BlockSpec(D11.shape, lambda i: (0, 0)),       # resident
                pl.BlockSpec(B1.shape, lambda i: (0, 0)),        # resident
            ],
            out_specs=pl.BlockSpec((nx, b_blk), lambda i: (0, i)),
        ),
        compiler_params=pltpu.CompilerParams(
            dimension_semantics=("parallel",),
            vmem_limit_bytes=vmem_limit),
        cost_estimate=cost,
    )(xiu, W_in, b_in, D11, B1)

    return out_t[:, :B].T                                        # (B, nx)


# ----------------------------------------------------------------------------
# Parameter construction (plain JAX glue == updateParameters in the module)
# ----------------------------------------------------------------------------
def init_params(key, nx, ny, nu, nq, epsilon=0.01, alpha=0.0):
    ks = jax.random.split(key, 8)
    std = 1.0
    Pstar = jax.random.normal(ks[0], (nx, nx)) * std
    Chi = jax.random.normal(ks[1], (nx, nq)) * std
    Y1 = jax.random.normal(ks[2], (nx, nx)) * std
    B2 = jax.random.normal(ks[3], (nx, nu)) * std
    D12 = jax.random.normal(ks[4], (nq, nu)) * std
    X = jax.random.normal(ks[5], (nx + nq, nx + nq)) * std
    # bias=False  ->  bx, bv are zeros
    bx = jnp.zeros((1, nx), jnp.float32)
    bv = jnp.zeros((1, nq), jnp.float32)

    # updateParameters():
    P = 0.5 * Pstar @ Pstar.T + epsilon * jnp.eye(nx)
    H = X @ X.T + epsilon * jnp.eye(nx + nq)
    H1 = H[:nx, :nx]
    H2 = H[:nx, nx:]
    H4 = H[nx:, nx:]
    Y = -0.5 * (H1 + alpha * P + Y1 - Y1.T)
    Lam = 0.5 * jnp.diag(jnp.diagonal(H4))
    P_inv = jnp.linalg.inv(P)
    Lam_inv = jnp.linalg.inv(Lam)
    A = P_inv @ Y                                   # F.linear(inv(P), Y.T)
    D11 = -Lam_inv @ jnp.tril(H4, -1)               # F.linear(inv(L), tril.T)
    C1 = Lam_inv @ Chi.T                            # F.linear(inv(L), Chi)
    Z = -H2 - Chi
    B1 = P_inv @ Z                                  # F.linear(inv(P), Z.T)

    return dict(A=A.astype(jnp.float32), B1=B1.astype(jnp.float32),
                B2=B2.astype(jnp.float32), C1=C1.astype(jnp.float32),
                D11=D11.astype(jnp.float32), D12=D12.astype(jnp.float32),
                bv=bv, bx=bx)


# ----------------------------------------------------------------------------
# Pure-JAX reference (mirrors the PyTorch forward exactly) for validation
# ----------------------------------------------------------------------------
def reference_forward(xi, u, p):
    B = xi.shape[0]
    nq = p["C1"].shape[0]
    w = jnp.zeros((B, nq), jnp.float32)
    for i in range(nq):
        v = (xi @ p["C1"][i, :] + w @ p["D11"][i, :]
             + p["bv"][0, i] + u @ p["D12"][i, :])
        w = w.at[:, i].set(jnp.tanh(v))
    return xi @ p["A"].T + w @ p["B1"].T + p["bx"] + u @ p["B2"].T


# ----------------------------------------------------------------------------
if __name__ == "__main__":
    nx, ny, nu, nq = 16, 4, 4, 8
    batch = 8

    key = jax.random.PRNGKey(0)
    k_par, k_xi, k_u = jax.random.split(key, 3)
    params = init_params(k_par, nx, ny, nu, nq, epsilon=0.01, alpha=0.0)
    packed = pack_weights(params)            # one-time weight packing

    xi = jax.random.normal(k_xi, (batch, nx), dtype=jnp.float32)
    u = jax.random.normal(k_u, (batch, nu), dtype=jnp.float32)

    fwd = jax.jit(lambda xi_, u_: contractive_forward(xi_, u_, packed))
    out = jax.block_until_ready(fwd(xi, u))

    ref = reference_forward(xi, u, params)
    assert out.shape == (batch, nx)
    assert jnp.allclose(out, ref, atol=1e-4, rtol=1e-4), "mismatch vs reference"

    print("KERNEL_OK")
</pallas_src>

<mosaic_0001>
module attributes {stable_mosaic.version = 11 : i64} {
  func.func @kernel(%arg0: i32, %arg1: memref<24x128xf32, #tpu.memory_space<vmem>>, %arg2: memref<24x24xf32, #tpu.memory_space<vmem>>, %arg3: memref<24x1xf32, #tpu.memory_space<vmem>>, %arg4: memref<8x8xf32, #tpu.memory_space<vmem>>, %arg5: memref<16x8xf32, #tpu.memory_space<vmem>>, %arg6: memref<16x128xf32, #tpu.memory_space<vmem>>) attributes {dimension_semantics = [#tpu.dimension_semantics<parallel>], iteration_bounds = array<i64: 1>, scalar_prefetch = 0 : i64, scratch_operands = 0 : i64, tpu.core_type = #tpu.core_type<tc>, window_params = [{transform_indices = @transform_0, window_bounds = array<i64: 24, 128>}, {pipeline_mode = #tpu.pipeline_mode<synchronous>, transform_indices = @transform_1, window_bounds = array<i64: 24, 24>}, {pipeline_mode = #tpu.pipeline_mode<synchronous>, transform_indices = @transform_2, window_bounds = array<i64: 24, 1>}, {pipeline_mode = #tpu.pipeline_mode<synchronous>, transform_indices = @transform_3, window_bounds = array<i64: 8, 8>}, {pipeline_mode = #tpu.pipeline_mode<synchronous>, transform_indices = @transform_4, window_bounds = array<i64: 16, 8>}, {transform_indices = @transform_5, window_bounds = array<i64: 16, 128>}]} {
    %c0 = arith.constant 0 : index
    %c0_0 = arith.constant 0 : index
    %0 = vector.load %arg2[%c0, %c0_0] : memref<24x24xf32, #tpu.memory_space<vmem>>, vector<24x24xf32>
    %c0_1 = arith.constant 0 : index
    %c0_2 = arith.constant 0 : index
    %1 = vector.load %arg1[%c0_1, %c0_2] : memref<24x128xf32, #tpu.memory_space<vmem>>, vector<24x128xf32>
    %cst = arith.constant dense<0.000000e+00> : vector<24x128xf32>
    %2 = tpu.matmul %0, %1, %cst {dimension_numbers = #tpu.dot_dimension_numbers<[1], [0], [0], [1], [0, 0, 1, 1], [], []>} : vector<24x24xf32>, vector<24x128xf32>, vector<24x128xf32> -> vector<24x128xf32>
    %c0_3 = arith.constant 0 : index
    %c0_4 = arith.constant 0 : index
    %3 = vector.load %arg3[%c0_3, %c0_4] : memref<24x1xf32, #tpu.memory_space<vmem>>, vector<24x1xf32>
    %4 = vector.broadcast %3 : vector<24x1xf32> to vector<24x128xf32>
    %5 = arith.addf %2, %4 : vector<24x128xf32>
    %6 = vector.extract_strided_slice %5 {offsets = [0, 0], sizes = [8, 128], strides = [1, 1]} : vector<24x128xf32> to vector<8x128xf32>
    %7 = vector.extract_strided_slice %5 {offsets = [8, 0], sizes = [16, 128], strides = [1, 1]} : vector<24x128xf32> to vector<16x128xf32>
    %c0_5 = arith.constant 0 : index
    %c0_6 = arith.constant 0 : index
    %8 = vector.load %arg4[%c0_5, %c0_6] : memref<8x8xf32, #tpu.memory_space<vmem>>, vector<8x8xf32>
    %c0_7 = arith.constant 0 : index
    %c0_8 = arith.constant 0 : index
    %9 = vector.load %arg5[%c0_7, %c0_8] : memref<16x8xf32, #tpu.memory_space<vmem>>, vector<16x8xf32>
    %10 = vector.extract_strided_slice %6 {offsets = [0, 0], sizes = [1, 128], strides = [1, 1]} : vector<8x128xf32> to vector<1x128xf32>
    %11 = math.tanh %10 : vector<1x128xf32>
    %12 = vector.extract_strided_slice %9 {offsets = [0, 0], sizes = [16, 1], strides = [1, 1]} : vector<16x8xf32> to vector<16x1xf32>
    %13 = vector.broadcast %12 : vector<16x1xf32> to vector<16x128xf32>
    %14 = vector.broadcast %11 : vector<1x128xf32> to vector<16x128xf32>
    %15 = arith.mulf %13, %14 : vector<16x128xf32>
    %16 = arith.addf %7, %15 : vector<16x128xf32>
    %17 = vector.extract_strided_slice %8 {offsets = [0, 0], sizes = [8, 1], strides = [1, 1]} : vector<8x8xf32> to vector<8x1xf32>
    %18 = vector.broadcast %17 : vector<8x1xf32> to vector<8x128xf32>
    %19 = vector.broadcast %11 : vector<1x128xf32> to vector<8x128xf32>
    %20 = arith.mulf %18, %19 : vector<8x128xf32>
    %21 = arith.addf %6, %20 : vector<8x128xf32>
    %22 = vector.extract_strided_slice %21 {offsets = [1, 0], sizes = [1, 128], strides = [1, 1]} : vector<8x128xf32> to vector<1x128xf32>
    %23 = math.tanh %22 : vector<1x128xf32>
    %24 = vector.extract_strided_slice %9 {offsets = [0, 1], sizes = [16, 1], strides = [1, 1]} : vector<16x8xf32> to vector<16x1xf32>
    %25 = vector.broadcast %24 : vector<16x1xf32> to vector<16x128xf32>
    %26 = vector.broadcast %23 : vector<1x128xf32> to vector<16x128xf32>
    %27 = arith.mulf %25, %26 : vector<16x128xf32>
    %28 = arith.addf %16, %27 : vector<16x128xf32>
    %29 = vector.extract_strided_slice %8 {offsets = [0, 1], sizes = [8, 1], strides = [1, 1]} : vector<8x8xf32> to vector<8x1xf32>
    %30 = vector.broadcast %29 : vector<8x1xf32> to vector<8x128xf32>
    %31 = vector.broadcast %23 : vector<1x128xf32> to vector<8x128xf32>
    %32 = arith.mulf %30, %31 : vector<8x128xf32>
    %33 = arith.addf %21, %32 : vector<8x128xf32>
    %34 = vector.extract_strided_slice %33 {offsets = [2, 0], sizes = [1, 128], strides = [1, 1]} : vector<8x128xf32> to vector<1x128xf32>
    %35 = math.tanh %34 : vector<1x128xf32>
    %36 = vector.extract_strided_slice %9 {offsets = [0, 2], sizes = [16, 1], strides = [1, 1]} : vector<16x8xf32> to vector<16x1xf32>
    %37 = vector.broadcast %36 : vector<16x1xf32> to vector<16x128xf32>
    %38 = vector.broadcast %35 : vector<1x128xf32> to vector<16x128xf32>
    %39 = arith.mulf %37, %38 : vector<16x128xf32>
    %40 = arith.addf %28, %39 : vector<16x128xf32>
    %41 = vector.extract_strided_slice %8 {offsets = [0, 2], sizes = [8, 1], strides = [1, 1]} : vector<8x8xf32> to vector<8x1xf32>
    %42 = vector.broadcast %41 : vector<8x1xf32> to vector<8x128xf32>
    %43 = vector.broadcast %35 : vector<1x128xf32> to vector<8x128xf32>
    %44 = arith.mulf %42, %43 : vector<8x128xf32>
    %45 = arith.addf %33, %44 : vector<8x128xf32>
    %46 = vector.extract_strided_slice %45 {offsets = [3, 0], sizes = [1, 128], strides = [1, 1]} : vector<8x128xf32> to vector<1x128xf32>
    %47 = math.tanh %46 : vector<1x128xf32>
    %48 = vector.extract_strided_slice %9 {offsets = [0, 3], sizes = [16, 1], strides = [1, 1]} : vector<16x8xf32> to vector<16x1xf32>
    %49 = vector.broadcast %48 : vector<16x1xf32> to vector<16x128xf32>
    %50 = vector.broadcast %47 : vector<1x128xf32> to vector<16x128xf32>
    %51 = arith.mulf %49, %50 : vector<16x128xf32>
    %52 = arith.addf %40, %51 : vector<16x128xf32>
    %53 = vector.extract_strided_slice %8 {offsets = [0, 3], sizes = [8, 1], strides = [1, 1]} : vector<8x8xf32> to vector<8x1xf32>
    %54 = vector.broadcast %53 : vector<8x1xf32> to vector<8x128xf32>
    %55 = vector.broadcast %47 : vector<1x128xf32> to vector<8x128xf32>
    %56 = arith.mulf %54, %55 : vector<8x128xf32>
    %57 = arith.addf %45, %56 : vector<8x128xf32>
    %58 = vector.extract_strided_slice %57 {offsets = [4, 0], sizes = [1, 128], strides = [1, 1]} : vector<8x128xf32> to vector<1x128xf32>
    %59 = math.tanh %58 : vector<1x128xf32>
    %60 = vector.extract_strided_slice %9 {offsets = [0, 4], sizes = [16, 1], strides = [1, 1]} : vector<16x8xf32> to vector<16x1xf32>
    %61 = vector.broadcast %60 : vector<16x1xf32> to vector<16x128xf32>
    %62 = vector.broadcast %59 : vector<1x128xf32> to vector<16x128xf32>
    %63 = arith.mulf %61, %62 : vector<16x128xf32>
    %64 = arith.addf %52, %63 : vector<16x128xf32>
    %65 = vector.extract_strided_slice %8 {offsets = [0, 4], sizes = [8, 1], strides = [1, 1]} : vector<8x8xf32> to vector<8x1xf32>
    %66 = vector.broadcast %65 : vector<8x1xf32> to vector<8x128xf32>
    %67 = vector.broadcast %59 : vector<1x128xf32> to vector<8x128xf32>
    %68 = arith.mulf %66, %67 : vector<8x128xf32>
    %69 = arith.addf %57, %68 : vector<8x128xf32>
    %70 = vector.extract_strided_slice %69 {offsets = [5, 0], sizes = [1, 128], strides = [1, 1]} : vector<8x128xf32> to vector<1x128xf32>
    %71 = math.tanh %70 : vector<1x128xf32>
    %72 = vector.extract_strided_slice %9 {offsets = [0, 5], sizes = [16, 1], strides = [1, 1]} : vector<16x8xf32> to vector<16x1xf32>
    %73 = vector.broadcast %72 : vector<16x1xf32> to vector<16x128xf32>
    %74 = vector.broadcast %71 : vector<1x128xf32> to vector<16x128xf32>
    %75 = arith.mulf %73, %74 : vector<16x128xf32>
    %76 = arith.addf %64, %75 : vector<16x128xf32>
    %77 = vector.extract_strided_slice %8 {offsets = [0, 5], sizes = [8, 1], strides = [1, 1]} : vector<8x8xf32> to vector<8x1xf32>
    %78 = vector.broadcast %77 : vector<8x1xf32> to vector<8x128xf32>
    %79 = vector.broadcast %71 : vector<1x128xf32> to vector<8x128xf32>
    %80 = arith.mulf %78, %79 : vector<8x128xf32>
    %81 = arith.addf %69, %80 : vector<8x128xf32>
    %82 = vector.extract_strided_slice %81 {offsets = [6, 0], sizes = [1, 128], strides = [1, 1]} : vector<8x128xf32> to vector<1x128xf32>
    %83 = math.tanh %82 : vector<1x128xf32>
    %84 = vector.extract_strided_slice %9 {offsets = [0, 6], sizes = [16, 1], strides = [1, 1]} : vector<16x8xf32> to vector<16x1xf32>
    %85 = vector.broadcast %84 : vector<16x1xf32> to vector<16x128xf32>
    %86 = vector.broadcast %83 : vector<1x128xf32> to vector<16x128xf32>
    %87 = arith.mulf %85, %86 : vector<16x128xf32>
    %88 = arith.addf %76, %87 : vector<16x128xf32>
    %89 = vector.extract_strided_slice %8 {offsets = [0, 6], sizes = [8, 1], strides = [1, 1]} : vector<8x8xf32> to vector<8x1xf32>
    %90 = vector.broadcast %89 : vector<8x1xf32> to vector<8x128xf32>
    %91 = vector.broadcast %83 : vector<1x128xf32> to vector<8x128xf32>
    %92 = arith.mulf %90, %91 : vector<8x128xf32>
    %93 = arith.addf %81, %92 : vector<8x128xf32>
    %94 = vector.extract_strided_slice %93 {offsets = [7, 0], sizes = [1, 128], strides = [1, 1]} : vector<8x128xf32> to vector<1x128xf32>
    %95 = math.tanh %94 : vector<1x128xf32>
    %96 = vector.extract_strided_slice %9 {offsets = [0, 7], sizes = [16, 1], strides = [1, 1]} : vector<16x8xf32> to vector<16x1xf32>
    %97 = vector.broadcast %96 : vector<16x1xf32> to vector<16x128xf32>
    %98 = vector.broadcast %95 : vector<1x128xf32> to vector<16x128xf32>
    %99 = arith.mulf %97, %98 : vector<16x128xf32>
    %100 = arith.addf %88, %99 : vector<16x128xf32>
    %c0_9 = arith.constant 0 : index
    %c0_10 = arith.constant 0 : index
    %101 = vector.load %arg6[%c0_9, %c0_10] : memref<16x128xf32, #tpu.memory_space<vmem>>, vector<16x128xf32>
    tpu.vector_store %arg6[%c0_9, %c0_10], %100 {strides = array<i32>} : memref<16x128xf32, #tpu.memory_space<vmem>>, vector<16x128xf32>,
    return
  }
  func.func @transform_0(%arg0: i32) -> (i32, i32) {
    %c0_i32 = arith.constant 0 : i32
    %c0_i32_0 = arith.constant 0 : i32
    return %c0_i32, %arg0 : i32, i32
  }
  func.func @transform_1(%arg0: i32) -> (i32, i32) {
    %c0_i32 = arith.constant 0 : i32
    %c0_i32_0 = arith.constant 0 : i32
    %c0_i32_1 = arith.constant 0 : i32
    return %c0_i32, %c0_i32_0 : i32, i32
  }
  func.func @transform_2(%arg0: i32) -> (i32, i32) {
    %c0_i32 = arith.constant 0 : i32
    %c0_i32_0 = arith.constant 0 : i32
    %c0_i32_1 = arith.constant 0 : i32
    return %c0_i32, %c0_i32_0 : i32, i32
  }
  func.func @transform_3(%arg0: i32) -> (i32, i32) {
    %c0_i32 = arith.constant 0 : i32
    %c0_i32_0 = arith.constant 0 : i32
    %c0_i32_1 = arith.constant 0 : i32
    return %c0_i32, %c0_i32_0 : i32, i32
  }
  func.func @transform_4(%arg0: i32) -> (i32, i32) {
    %c0_i32 = arith.constant 0 : i32
    %c0_i32_0 = arith.constant 0 : i32
    %c0_i32_1 = arith.constant 0 : i32
    return %c0_i32, %c0_i32_0 : i32, i32
  }
  func.func @transform_5(%arg0: i32) -> (i32, i32) {
    %c0_i32 = arith.constant 0 : i32
    %c0_i32_0 = arith.constant 0 : i32
    return %c0_i32, %arg0 : i32, i32
  }
}

</mosaic_0001>

<llo_original>
// kernel: _lambda_.1
$region0: #{_lambda_.1}
  #allocation0 [shape = 'u32[]', space=smem, size = 0x4, offset = 0x4, fixed_abs, tag = 'smem constant byte address 0x4 - core index']
  #allocation1 [shape = 'u32[144,128]{1,0:T(1,128)}', space=vmem, size = 0x12000, scoped, tag = 'internal scratch']
  %s0 = inlined_call_operand.vmem [shape: f32[24,128], index: 0, kind: input, shape index: {}]
  %s1 = inlined_call_operand.vmem [shape: f32[24,24], index: 1, kind: input, shape index: {}]
  %s2 = inlined_call_operand.vmem [shape: f32[24,1], index: 2, kind: input, shape index: {}]
  %s3 = inlined_call_operand.vmem [shape: f32[8,8], index: 3, kind: input, shape index: {}]
  %s4 = inlined_call_operand.vmem [shape: f32[16,8], index: 4, kind: input, shape index: {}]
  %s5 = inlined_call_operand.vmem [shape: f32[16,128], index: 5, kind: output, shape index: {}]
  %s6 = sld [smem:[#allocation0]]
  $region30: #{_lambda_.1} parent=0
    _
  %s8 = ssub.s32 1, %s6
  %s9 = scalar_select 0, %s8, %s6
  // Predicated region
  $region2: #{_lambda_.1} parent=0 // pred_check
    _
  $region3: #{_lambda_.1} parent=0 // pred_check_branch
    %11 = sbr.rel (0) target = $region5
  $region4: #{_lambda_.1} parent=0 // pred_region
    _
  $region5: #{_lambda_.1} parent=0 // pred_fallthru
    _
  // Predicated region
  $region6: #{_lambda_.1} parent=0 // pred_check
    _
  $region7: #{_lambda_.1} parent=0 // pred_check_branch
    %13 = sbr.rel (0) target = $region9
  $region8: #{_lambda_.1} parent=0 // pred_region
    _
  $region9: #{_lambda_.1} parent=0 // pred_fallthru
    _
  // Predicated region
  $region10: #{_lambda_.1} parent=0 // pred_check
    _
  $region11: #{_lambda_.1} parent=0 // pred_check_branch
    %15 = sbr.rel (0) target = $region13
  $region12: #{_lambda_.1} parent=0 // pred_region
    _
  $region13: #{_lambda_.1} parent=0 // pred_fallthru
    _
  // Predicated region
  $region14: #{_lambda_.1} parent=0 // pred_check
    _
  $region15: #{_lambda_.1} parent=0 // pred_check_branch
    %17 = sbr.rel (0) target = $region17
  $region16: #{_lambda_.1} parent=0 // pred_region
    _
  $region17: #{_lambda_.1} parent=0 // pred_fallthru
    _
  // Predicated region
  $region18: #{_lambda_.1} parent=0 // pred_check
    _
  $region19: #{_lambda_.1} parent=0 // pred_check_branch
    %19 = sbr.rel (0) target = $region21
  $region20: #{_lambda_.1} parent=0 // pred_region
    _
  $region21: #{_lambda_.1} parent=0 // pred_fallthru
    _
  %v20 = vld [vmem:[%s1] sm:$0xff]
  %v21 = vld [vmem:[%s1 + $0x8] sm:$0xff]
  %v22 = vld [vmem:[%s1 + $0x10] sm:$0xff]
  %v23 = vld [vmem:[%s0] sm:$0xff]
  %v24 = vld [vmem:[%s0 + $0x8] sm:$0xff]
  %v25 = vld [vmem:[%s0 + $0x10] sm:$0xff]
  %v26 = vld [vmem:[%s2] sm:$0xff]
  %v27 = vld [vmem:[%s2 + $0x8] sm:$0xff]
  %v28 = vld [vmem:[%s2 + $0x10] sm:$0xff]
  %30 = vset.pattern.permute.xlu0 0
  %31 = vperm.xlu0 %30, %v26
  %v32 = vpop.permute.xlu0 %31
  %35 = vset.pattern.permute.xlu0 0
  %36 = vperm.xlu0 %35, %v27
  %v37 = vpop.permute.xlu0 %36
  %40 = vset.pattern.permute.xlu0 0
  %41 = vperm.xlu0 %40, %v28
  %v42 = vpop.permute.xlu0 %41
  %vm44 = vcmask 195584
  %v46 = vsel %vm44, %v20, 0
  %v49 = vsel %vm44, %v21, 0
  %v52 = vsel %vm44, %v22, 0
  %54 = vmatprep.subr.mxu0 0.0
  %55 = vmatpush1.msra.mxu0 0.0
  %56 = vmatprep.subr.mxu0 0.0
  %57 = vmatpush1.msra.mxu0 0.0
  %58 = vmatprep.subr.mxu0 0.0
  %59 = vmatpush1.msra.mxu0 0.0
  %60 = vmatprep.subr.mxu0 0.0
  %61 = vmatpush1.msra.mxu0 0.0
  %62 = vmatprep.subr.mxu0 0.0
  %63 = vmatpush1.msra.mxu0 0.0
  %64 = vmatprep.subr.mxu0 0.0
  %65 = vmatpush1.msra.mxu0 0.0
  %66 = vmatprep.subr.mxu0 0.0
  %67 = vmatpush1.msra.mxu0 0.0
  %68 = vmatprep.subr.mxu0 0.0
  %69 = vmatpush1.msra.mxu0 0.0
  %70 = vmatprep.subr.mxu0 0.0
  %71 = vmatpush1.msra.mxu0 0.0
  %72 = vmatprep.subr.mxu0 0.0
  %73 = vmatpush1.msra.mxu0 0.0
  %74 = vmatprep.subr.mxu0 0.0
  %75 = vmatpush1.msra.mxu0 0.0
  %76 = vmatprep.subr.mxu0 0.0
  %77 = vmatpush1.msra.mxu0 0.0
  %78 = vmatprep.subr.mxu0 0.0
  %79 = vmatpush1.msra.mxu0 0.0
  %80 = vmatprep.subr.mxu0 0.0
  %81 = vmatpush1.msra.mxu0 %v25
  %82 = vmatprep.subr.mxu0 0.0
  %83 = vmatpush1.msra.mxu0 %v24
  %84 = vmatprep.subr.mxu0 0.0
  %85 = vmatpush1.msra.mxu0 %v23
  %86 = vmatprep.subr.mxu0 0.0
  %87 = vmatpush2.msra.mxu0 0.0
  %88 = vmatprep.subr.mxu0 0.0
  %89 = vmatpush2.msra.mxu0 0.0
  %90 = vmatprep.subr.mxu0 0.0
  %91 = vmatpush2.msra.mxu0 0.0
  %92 = vmatprep.subr.mxu0 0.0
  %93 = vmatpush2.msra.mxu0 0.0
  %94 = vmatprep.subr.mxu0 0.0
  %95 = vmatpush2.msra.mxu0 0.0
  %96 = vmatprep.subr.mxu0 0.0
  %97 = vmatpush2.msra.mxu0 0.0
  %98 = vmatprep.subr.mxu0 0.0
  %99 = vmatpush2.msra.mxu0 0.0
  %100 = vmatprep.subr.mxu0 0.0
  %101 = vmatpush2.msra.mxu0 0.0
  %102 = vmatprep.subr.mxu0 0.0
  %103 = vmatpush2.msra.mxu0 0.0
  %104 = vmatprep.subr.mxu0 0.0
  %105 = vmatpush2.msra.mxu0 0.0
  %106 = vmatprep.subr.mxu0 0.0
  %107 = vmatpush2.msra.mxu0 0.0
  %108 = vmatprep.subr.mxu0 0.0
  %109 = vmatpush2.msra.mxu0 0.0
  %110 = vmatprep.subr.mxu0 0.0
  %111 = vmatpush2.msra.mxu0 0.0
  %112 = vmatprep.subr.mxu0 0.0
  %113 = vmatpush2.msra.mxu0 0.0
  %114 = vmatprep.subr.mxu0 0.0
  %115 = vmatpush2.msra.mxu0 0.0
  %116 = vmatprep.subr.mxu0 0.0
  %117 = vmatpush2.msra.mxu0 0.0
  %118 = vmatprep.mubr.f32.mxu0 0.0
  %119 = vmatmul.mubr.f32.gmra.mxu0 %v46
  %v120 = vpop.f32.mrf.mxu0
  %v121 = vadd.f32 %v32, %v120
  %v122 = vpop.f32.mrf.mxu0
  %123 = vmatprep.mubr.f32.mxu0 0.0
  %124 = vmatmul.mubr.f32.gmra.mxu0 %v49
  %v125 = vpop.f32.mrf.mxu0
  %v126 = vadd.f32 %v37, %v125
  %v127 = vpop.f32.mrf.mxu0
  %128 = vmatprep.mubr.f32.mxu0 0.0
  %129 = vmatmul.mubr.f32.gmra.mxu0 %v52
  %v130 = vpop.f32.mrf.mxu0
  %v131 = vadd.f32 %v42, %v130
  %v132 = vpop.f32.mrf.mxu0
  %133 = vdwg.mxu0
  %v134 = vld [vmem:[%s3] sm:$0xff]
  %v135 = vld [vmem:[%s4] sm:$0xff]
  %v136 = vld [vmem:[%s4 + $0x8] sm:$0xff]
  %v137 = vtanh.pop %v121
  %139 = vset.pattern.permute.xlu0 0
  %140 = vperm.xlu0 %139, %v135
  %v141 = vpop.permute.xlu0 %140
  %144 = vset.pattern.permute.xlu0 0
  %145 = vperm.xlu0 %144, %v136
  %v146 = vpop.permute.xlu0 %145
  %v148 = vlaneseq
  %v149 = vshrl.u32 %v148, 7
  %v150 = vsub.s32 0, %v149
  %v151 = vrot.slane %v137, %v150
  %v152 = vmul.f32 %v141, %v151
  %v153 = vmul.f32 %v146, %v151
  %v154 = vadd.f32 %v126, %v152
  %v155 = vadd.f32 %v131, %v153
  %157 = vset.pattern.permute.xlu0 0
  %158 = vperm.xlu0 %157, %v134
  %v159 = vpop.permute.xlu0 %158
  %v161 = vmul.f32 %v159, %v151
  %v162 = vadd.f32 %v121, %v161
  %v163 = vtanh.pop %v162
  %164 = vset.pattern.permute.xlu0 1
  %165 = vperm.xlu0 %164, %v135
  %v166 = vpop.permute.xlu0 %165
  %168 = vset.pattern.permute.xlu0 1
  %169 = vperm.xlu0 %168, %v136
  %v170 = vpop.permute.xlu0 %169
  %v172 = vlaneseq
  %v173 = vshrl.u32 %v172, 7
  %v174 = vsub.s32 1, %v173
  %v175 = vrot.slane %v163, %v174
  %v176 = vmul.f32 %v166, %v175
  %v177 = vmul.f32 %v170, %v175
  %v178 = vadd.f32 %v154, %v176
  %v179 = vadd.f32 %v155, %v177
  %180 = vset.pattern.permute.xlu0 1
  %181 = vperm.xlu0 %180, %v134
  %v182 = vpop.permute.xlu0 %181
  %v184 = vmul.f32 %v182, %v175
  %v185 = vadd.f32 %v162, %v184
  %v186 = vtanh.pop %v185
  %187 = vset.pattern.permute.xlu0 2
  %188 = vperm.xlu0 %187, %v135
  %v189 = vpop.permute.xlu0 %188
  %191 = vset.pattern.permute.xlu0 2
  %192 = vperm.xlu0 %191, %v136
  %v193 = vpop.permute.xlu0 %192
  %v195 = vlaneseq
  %v196 = vshrl.u32 %v195, 7
  %v197 = vsub.s32 2, %v196
  %v198 = vrot.slane %v186, %v197
  %v199 = vmul.f32 %v189, %v198
  %v200 = vmul.f32 %v193, %v198
  %v201 = vadd.f32 %v178, %v199
  %v202 = vadd.f32 %v179, %v200
  %203 = vset.pattern.permute.xlu0 2
  %204 = vperm.xlu0 %203, %v134
  %v205 = vpop.permute.xlu0 %204
  %v207 = vmul.f32 %v205, %v198
  %v208 = vadd.f32 %v185, %v207
  %v209 = vtanh.pop %v208
  %210 = vset.pattern.permute.xlu0 3
  %211 = vperm.xlu0 %210, %v135
  %v212 = vpop.permute.xlu0 %211
  %214 = vset.pattern.permute.xlu0 3
  %215 = vperm.xlu0 %214, %v136
  %v216 = vpop.permute.xlu0 %215
  %v218 = vlaneseq
  %v219 = vshrl.u32 %v218, 7
  %v220 = vsub.s32 3, %v219
  %v221 = vrot.slane %v209, %v220
  %v222 = vmul.f32 %v212, %v221
  %v223 = vmul.f32 %v216, %v221
  %v224 = vadd.f32 %v201, %v222
  %v225 = vadd.f32 %v202, %v223
  %226 = vset.pattern.permute.xlu0 3
  %227 = vperm.xlu0 %226, %v134
  %v228 = vpop.permute.xlu0 %227
  %v230 = vmul.f32 %v228, %v221
  %v231 = vadd.f32 %v208, %v230
  %v232 = vtanh.pop %v231
  %233 = vset.pattern.permute.xlu0 4
  %234 = vperm.xlu0 %233, %v135
  %v235 = vpop.permute.xlu0 %234
  %237 = vset.pattern.permute.xlu0 4
  %238 = vperm.xlu0 %237, %v136
  %v239 = vpop.permute.xlu0 %238
  %v241 = vlaneseq
  %v242 = vshrl.u32 %v241, 7
  %v243 = vsub.s32 4, %v242
  %v244 = vrot.slane %v232, %v243
  %v245 = vmul.f32 %v235, %v244
  %v246 = vmul.f32 %v239, %v244
  %v247 = vadd.f32 %v224, %v245
  %v248 = vadd.f32 %v225, %v246
  %249 = vset.pattern.permute.xlu0 4
  %250 = vperm.xlu0 %249, %v134
  %v251 = vpop.permute.xlu0 %250
  %v253 = vmul.f32 %v251, %v244
  %v254 = vadd.f32 %v231, %v253
  %v255 = vtanh.pop %v254
  %256 = vset.pattern.permute.xlu0 5
  %257 = vperm.xlu0 %256, %v135
  %v258 = vpop.permute.xlu0 %257
  %260 = vset.pattern.permute.xlu0 5
  %261 = vperm.xlu0 %260, %v136
  %v262 = vpop.permute.xlu0 %261
  %v264 = vlaneseq
  %v265 = vshrl.u32 %v264, 7
  %v266 = vsub.s32 5, %v265
  %v267 = vrot.slane %v255, %v266
  %v268 = vmul.f32 %v258, %v267
  %v269 = vmul.f32 %v262, %v267
  %v270 = vadd.f32 %v247, %v268
  %v271 = vadd.f32 %v248, %v269
  %272 = vset.pattern.permute.xlu0 5
  %273 = vperm.xlu0 %272, %v134
  %v274 = vpop.permute.xlu0 %273
  %v276 = vmul.f32 %v274, %v267
  %v277 = vadd.f32 %v254, %v276
  %v278 = vtanh.pop %v277
  %279 = vset.pattern.permute.xlu0 6
  %280 = vperm.xlu0 %279, %v135
  %v281 = vpop.permute.xlu0 %280
  %283 = vset.pattern.permute.xlu0 6
  %284 = vperm.xlu0 %283, %v136
  %v285 = vpop.permute.xlu0 %284
  %v287 = vlaneseq
  %v288 = vshrl.u32 %v287, 7
  %v289 = vsub.s32 6, %v288
  %v290 = vrot.slane %v278, %v289
  %v291 = vmul.f32 %v281, %v290
  %v292 = vmul.f32 %v285, %v290
  %v293 = vadd.f32 %v270, %v291
  %v294 = vadd.f32 %v271, %v292
  %295 = vset.pattern.permute.xlu0 6
  %296 = vperm.xlu0 %295, %v134
  %v297 = vpop.permute.xlu0 %296
  %v299 = vmul.f32 %v297, %v290
  %v300 = vadd.f32 %v277, %v299
  %v301 = vtanh.pop %v300
  %302 = vset.pattern.permute.xlu0 7
  %303 = vperm.xlu0 %302, %v135
  %v304 = vpop.permute.xlu0 %303
  %306 = vset.pattern.permute.xlu0 7
  %307 = vperm.xlu0 %306, %v136
  %v308 = vpop.permute.xlu0 %307
  %v310 = vlaneseq
  %v311 = vshrl.u32 %v310, 7
  %v312 = vsub.s32 7, %v311
  %v313 = vrot.slane %v301, %v312
  %v314 = vmul.f32 %v304, %v313
  %v315 = vmul.f32 %v308, %v313
  %v316 = vadd.f32 %v293, %v314
  %v317 = vadd.f32 %v294, %v315
  %318 = vst [vmem:[%s5] sm:$0xff] %v316
  %319 = vst [vmem:[%s5 + $0x8] sm:$0xff] %v317
  // Predicated region
  $region22: #{_lambda_.1} parent=0 // pred_check
    _
  $region23: #{_lambda_.1} parent=0 // pred_check_branch
    %321 = sbr.rel (0) target = $region25
  $region24: #{_lambda_.1} parent=0 // pred_region
    _
  $region25: #{_lambda_.1} parent=0 // pred_fallthru
    _
  // Predicated region
  $region26: #{_lambda_.1} parent=0 // pred_check
    _
  $region27: #{_lambda_.1} parent=0 // pred_check_branch
    %323 = sbr.rel (0) target = $region29
  $region28: #{_lambda_.1} parent=0 // pred_region
    _
  $region29: #{_lambda_.1} parent=0 // pred_fallthru
    _

</llo_original>
